<compile_context>
chip_gen: v6e
topology: v6e:2x2x1
jax: 0.10.0
libtpu: 0.0.40
codegen_flags: <defaults>
</compile_context>

<pallas_src>
import jax
import jax.numpy as jnp
from jax.experimental import pallas as pl
from jax.experimental.pallas import tpu as pltpu

LANE = 128


def _round_up(n, m):
    return (n + m - 1) // m * m


def weightnet_kernel(x_ref, w1_ref, b1_ref, w23_ref, b23_ref, o_ref):
    # fc1: bf16 MXU matmul with f32 accumulation; bias + ReLU in f32 (dropout = identity).
    h1 = jnp.dot(x_ref[...], w1_ref[...], preferred_element_type=jnp.float32)
    h1 = jnp.maximum(h1 + b1_ref[...], 0.0)
    # fused fc2+fc3 (exact algebra in eval mode): out = h1 @ (w2 @ w3) + (b2 @ w3 + b3)
    out = jnp.dot(h1.astype(jnp.bfloat16), w23_ref[...],
                  preferred_element_type=jnp.float32) + b23_ref[...]
    o_ref[...] = out.astype(o_ref.dtype)


def weightnet_forward(x, params, *, tile_b=512):
    """WeightNet eval-mode forward: relu(x@w1+b1) @ (w2@w3) + (b2@w3 + b3)."""
    w1, b1, w2, b2, w3, b3 = params
    B, d_in = x.shape
    hidden = w1.shape[1]   # 100
    d_out = w3.shape[1]    # 1

    # ---- algebraic fusion of fc2 + fc3 (no nonlinearity between them in eval mode) ----
    w23 = w2 @ w3                      # (hidden, d_out)
    b23 = b2 @ w3 + b3                 # (1, d_out)

    # ---- lane/sublane-friendly zero padding ----
    d_in_p = _round_up(d_in, LANE)     # 512 -> 512
    h_p = _round_up(hidden, LANE)      # 100 -> 128
    d_out_p = LANE                     # lane-dense output; real result lives in column 0

    # Batch tile: big tiles when the batch is large (amortize per-step overhead),
    # multiple of 16 rows for clean bf16 sublane packing.
    tb = min(tile_b, _round_up(B, 16))
    b_p = _round_up(B, tb)

    xp = jnp.zeros((b_p, d_in_p), jnp.bfloat16).at[:B, :d_in].set(x.astype(jnp.bfloat16))
    w1p = jnp.zeros((d_in_p, h_p), jnp.bfloat16).at[:d_in, :hidden].set(w1.astype(jnp.bfloat16))
    b1p = jnp.zeros((1, h_p), jnp.float32).at[:, :hidden].set(b1.astype(jnp.float32))
    w23p = jnp.zeros((h_p, d_out_p), jnp.bfloat16).at[:hidden, :d_out].set(w23.astype(jnp.bfloat16))
    b23p = jnp.zeros((1, d_out_p), jnp.float32).at[:, :d_out].set(b23.astype(jnp.float32))

    # Weights / biases: constant index_map -> resident in VMEM across all batch tiles.
    resident = lambda shape: pl.BlockSpec(shape, lambda i: (0, 0))

    out_p = pl.pallas_call(
        weightnet_kernel,
        out_shape=jax.ShapeDtypeStruct((b_p, d_out_p), jnp.float32),
        grid_spec=pl.GridSpec(
            grid=(b_p // tb,),
            in_specs=[
                pl.BlockSpec((tb, d_in_p), lambda i: (i, 0)),   # x tile (pipelined)
                resident((d_in_p, h_p)),                        # w1  (bf16, resident)
                resident((1, h_p)),                             # b1  (f32)
                resident((h_p, d_out_p)),                       # fused w2@w3 (bf16)
                resident((1, d_out_p)),                         # fused bias  (f32)
            ],
            out_specs=pl.BlockSpec((tb, d_out_p), lambda i: (i, 0)),
        ),
        compiler_params=pltpu.CompilerParams(
            dimension_semantics=("parallel",),  # v7x: shard batch tiles across both TCs
        ),
    )(xp, w1p, b1p, w23p, b23p)

    return out_p[:B, :d_out]


def init_params(key, d_in=512, hidden=100, d_out=1):
    """Deterministic init mimicking torch.nn.Linear default (U(-1/sqrt(fan_in), 1/sqrt(fan_in)))."""
    ks = jax.random.split(key, 6)

    def linear(kw, kb, fan_in, fan_out):
        bound = 1.0 / jnp.sqrt(fan_in)
        w = jax.random.uniform(kw, (fan_in, fan_out), jnp.float32, -bound, bound)
        b = jax.random.uniform(kb, (1, fan_out), jnp.float32, -bound, bound)
        return w, b

    w1, b1 = linear(ks[0], ks[1], d_in, hidden)
    w2, b2 = linear(ks[2], ks[3], hidden, hidden)
    w3, b3 = linear(ks[4], ks[5], hidden, d_out)
    return (w1, b1, w2, b2, w3, b3)


def weightnet_ref(x, params):
    """Pure-JAX f32 reference matching the PyTorch module in eval mode."""
    w1, b1, w2, b2, w3, b3 = params
    h1 = jnp.maximum(x @ w1 + b1, 0.0)
    h2 = h1 @ w2 + b2
    return h2 @ w3 + b3


def weightnet_ref_bf16(x, params):
    """Reference with the same bf16 quantization / fc2+fc3 fusion as the kernel."""
    w1, b1, w2, b2, w3, b3 = params
    w23 = w2 @ w3
    b23 = b2 @ w3 + b3
    h1 = jnp.dot(x.astype(jnp.bfloat16), w1.astype(jnp.bfloat16),
                 preferred_element_type=jnp.float32)
    h1 = jnp.maximum(h1 + b1, 0.0)
    return jnp.dot(h1.astype(jnp.bfloat16), w23.astype(jnp.bfloat16),
                   preferred_element_type=jnp.float32) + b23


if __name__ == "__main__":
    key = jax.random.PRNGKey(0)
    kx, kp = jax.random.split(key)

    B, D_IN = 8, 512  # model_name='resnet' -> fc1 in_features = 512
    x = jax.random.normal(kx, (B, D_IN), jnp.float32)
    params = init_params(kp, d_in=D_IN, hidden=100, d_out=1)

    fwd = jax.jit(weightnet_forward)
    out = jax.block_until_ready(fwd(x, params))
    assert out.shape == (B, 1), out.shape

    # Tight check vs a reference using identical bf16 quantization + fusion.
    ref_q = weightnet_ref_bf16(x, params)
    assert jnp.allclose(out, ref_q, atol=2e-3, rtol=2e-3), "mismatch vs bf16-quantized reference"

    # Loose check vs the full-f32 reference (bf16 input/weight rounding only).
    ref = weightnet_ref(x, params)
    assert jnp.allclose(out, ref, atol=3e-2, rtol=3e-2), "mismatch vs f32 reference"

    print("KERNEL_OK")
</pallas_src>

<mosaic_0001>
module attributes {stable_mosaic.version = 11 : i64} {
  func.func @weightnet_kernel(%arg0: i32, %arg1: memref<16x512xbf16, #tpu.memory_space<vmem>>, %arg2: memref<512x128xbf16, #tpu.memory_space<vmem>>, %arg3: memref<1x128xf32, #tpu.memory_space<vmem>>, %arg4: memref<128x128xbf16, #tpu.memory_space<vmem>>, %arg5: memref<1x128xf32, #tpu.memory_space<vmem>>, %arg6: memref<16x128xf32, #tpu.memory_space<vmem>>) attributes {dimension_semantics = [#tpu.dimension_semantics<parallel>], iteration_bounds = array<i64: 1>, scalar_prefetch = 0 : i64, scratch_operands = 0 : i64, tpu.core_type = #tpu.core_type<tc>, window_params = [{transform_indices = @transform_0, window_bounds = array<i64: 16, 512>}, {pipeline_mode = #tpu.pipeline_mode<synchronous>, transform_indices = @transform_1, window_bounds = array<i64: 512, 128>}, {pipeline_mode = #tpu.pipeline_mode<synchronous>, transform_indices = @transform_2, window_bounds = array<i64: 1, 128>}, {pipeline_mode = #tpu.pipeline_mode<synchronous>, transform_indices = @transform_3, window_bounds = array<i64: 128, 128>}, {pipeline_mode = #tpu.pipeline_mode<synchronous>, transform_indices = @transform_4, window_bounds = array<i64: 1, 128>}, {transform_indices = @transform_5, window_bounds = array<i64: 16, 128>}]} {
    %c0 = arith.constant 0 : index
    %c0_0 = arith.constant 0 : index
    %0 = vector.load %arg1[%c0, %c0_0] : memref<16x512xbf16, #tpu.memory_space<vmem>>, vector<16x512xbf16>
    %c0_1 = arith.constant 0 : index
    %c0_2 = arith.constant 0 : index
    %1 = vector.load %arg2[%c0_1, %c0_2] : memref<512x128xbf16, #tpu.memory_space<vmem>>, vector<512x128xbf16>
    %cst = arith.constant dense<0.000000e+00> : vector<16x128xf32>
    %2 = tpu.matmul %0, %1, %cst {dimension_numbers = #tpu.dot_dimension_numbers<[1], [0], [0], [1], [0, 0, 1, 1], [], []>} : vector<16x512xbf16>, vector<512x128xbf16>, vector<16x128xf32> -> vector<16x128xf32>
    %c0_3 = arith.constant 0 : index
    %c0_4 = arith.constant 0 : index
    %3 = vector.load %arg3[%c0_3, %c0_4] : memref<1x128xf32, #tpu.memory_space<vmem>>, vector<1x128xf32>
    %4 = vector.broadcast %3 : vector<1x128xf32> to vector<16x128xf32>
    %5 = arith.addf %2, %4 : vector<16x128xf32>
    %cst_5 = arith.constant 0.000000e+00 : f32
    %6 = vector.broadcast %cst_5 : f32 to vector<16x128xf32>
    %7 = arith.maximumf %5, %6 : vector<16x128xf32>
    %8 = arith.truncf %7 : vector<16x128xf32> to vector<16x128xbf16>
    %c0_6 = arith.constant 0 : index
    %c0_7 = arith.constant 0 : index
    %9 = vector.load %arg4[%c0_6, %c0_7] : memref<128x128xbf16, #tpu.memory_space<vmem>>, vector<128x128xbf16>
    %cst_8 = arith.constant dense<0.000000e+00> : vector<16x128xf32>
    %10 = tpu.matmul %8, %9, %cst_8 {dimension_numbers = #tpu.dot_dimension_numbers<[1], [0], [0], [1], [0, 0, 1, 1], [], []>} : vector<16x128xbf16>, vector<128x128xbf16>, vector<16x128xf32> -> vector<16x128xf32>
    %c0_9 = arith.constant 0 : index
    %c0_10 = arith.constant 0 : index
    %11 = vector.load %arg5[%c0_9, %c0_10] : memref<1x128xf32, #tpu.memory_space<vmem>>, vector<1x128xf32>
    %12 = vector.broadcast %11 : vector<1x128xf32> to vector<16x128xf32>
    %13 = arith.addf %10, %12 : vector<16x128xf32>
    %c0_11 = arith.constant 0 : index
    %c0_12 = arith.constant 0 : index
    %14 = vector.load %arg6[%c0_11, %c0_12] : memref<16x128xf32, #tpu.memory_space<vmem>>, vector<16x128xf32>
    tpu.vector_store %arg6[%c0_11, %c0_12], %13 {strides = array<i32>} : memref<16x128xf32, #tpu.memory_space<vmem>>, vector<16x128xf32>,
    return
  }
  func.func @transform_0(%arg0: i32) -> (i32, i32) {
    %c0_i32 = arith.constant 0 : i32
    %c0_i32_0 = arith.constant 0 : i32
    return %arg0, %c0_i32 : i32, i32
  }
  func.func @transform_1(%arg0: i32) -> (i32, i32) {
    %c0_i32 = arith.constant 0 : i32
    %c0_i32_0 = arith.constant 0 : i32
    %c0_i32_1 = arith.constant 0 : i32
    return %c0_i32, %c0_i32_0 : i32, i32
  }
  func.func @transform_2(%arg0: i32) -> (i32, i32) {
    %c0_i32 = arith.constant 0 : i32
    %c0_i32_0 = arith.constant 0 : i32
    %c0_i32_1 = arith.constant 0 : i32
    return %c0_i32, %c0_i32_0 : i32, i32
  }
  func.func @transform_3(%arg0: i32) -> (i32, i32) {
    %c0_i32 = arith.constant 0 : i32
    %c0_i32_0 = arith.constant 0 : i32
    %c0_i32_1 = arith.constant 0 : i32
    return %c0_i32, %c0_i32_0 : i32, i32
  }
  func.func @transform_4(%arg0: i32) -> (i32, i32) {
    %c0_i32 = arith.constant 0 : i32
    %c0_i32_0 = arith.constant 0 : i32
    %c0_i32_1 = arith.constant 0 : i32
    return %c0_i32, %c0_i32_0 : i32, i32
  }
  func.func @transform_5(%arg0: i32) -> (i32, i32) {
    %c0_i32 = arith.constant 0 : i32
    %c0_i32_0 = arith.constant 0 : i32
    return %arg0, %c0_i32 : i32, i32
  }
}

</mosaic_0001>

<llo_original>
// kernel: weightnet_forward.1
$region0: #{weightnet_forward.1}
  #allocation0 [shape = 'u32[]', space=smem, size = 0x4, offset = 0x4, fixed_abs, tag = 'smem constant byte address 0x4 - core index']
  #allocation1 [shape = 'u32[144,128]{1,0:T(1,128)}', space=vmem, size = 0x12000, scoped, tag = 'internal scratch']
  %s0 = inlined_call_operand.vmem [shape: bf16[16,512], index: 0, kind: input, shape index: {}]
  %s1 = inlined_call_operand.vmem [shape: bf16[512,128], index: 1, kind: input, shape index: {}]
  %s2 = inlined_call_operand.vmem [shape: f32[1,128], index: 2, kind: input, shape index: {}]
  %s3 = inlined_call_operand.vmem [shape: bf16[128,128], index: 3, kind: input, shape index: {}]
  %s4 = inlined_call_operand.vmem [shape: f32[1,128], index: 4, kind: input, shape index: {}]
  %s5 = inlined_call_operand.vmem [shape: f32[16,128], index: 5, kind: output, shape index: {}]
  %s6 = sld [smem:[#allocation0]]
  $region30: #{weightnet_forward.1} parent=0
    _
  %s8 = ssub.s32 1, %s6
  %s9 = scalar_select 0, %s8, %s6
  // Predicated region
  $region2: #{weightnet_forward.1} parent=0 // pred_check
    _
  $region3: #{weightnet_forward.1} parent=0 // pred_check_branch
    %11 = sbr.rel (0) target = $region5
  $region4: #{weightnet_forward.1} parent=0 // pred_region
    _
  $region5: #{weightnet_forward.1} parent=0 // pred_fallthru
    _
  // Predicated region
  $region6: #{weightnet_forward.1} parent=0 // pred_check
    _
  $region7: #{weightnet_forward.1} parent=0 // pred_check_branch
    %13 = sbr.rel (0) target = $region9
  $region8: #{weightnet_forward.1} parent=0 // pred_region
    _
  $region9: #{weightnet_forward.1} parent=0 // pred_fallthru
    _
  // Predicated region
  $region10: #{weightnet_forward.1} parent=0 // pred_check
    _
  $region11: #{weightnet_forward.1} parent=0 // pred_check_branch
    %15 = sbr.rel (0) target = $region13
  $region12: #{weightnet_forward.1} parent=0 // pred_region
    _
  $region13: #{weightnet_forward.1} parent=0 // pred_fallthru
    _
  // Predicated region
  $region14: #{weightnet_forward.1} parent=0 // pred_check
    _
  $region15: #{weightnet_forward.1} parent=0 // pred_check_branch
    %17 = sbr.rel (0) target = $region17
  $region16: #{weightnet_forward.1} parent=0 // pred_region
    _
  $region17: #{weightnet_forward.1} parent=0 // pred_fallthru
    _
  // Predicated region
  $region18: #{weightnet_forward.1} parent=0 // pred_check
    _
  $region19: #{weightnet_forward.1} parent=0 // pred_check_branch
    %19 = sbr.rel (0) target = $region21
  $region20: #{weightnet_forward.1} parent=0 // pred_region
    _
  $region21: #{weightnet_forward.1} parent=0 // pred_fallthru
    _
  %v21 = vld [vmem:[%s0] sm:$0xff]
  %v22 = vld [vmem:[%s0 + $0x8] sm:$0xff]
  %v23 = vld [vmem:[%s0 + $0x10] sm:$0xff]
  %v24 = vld [vmem:[%s0 + $0x18] sm:$0xff]
  %v25 = vld [vmem:[%s1] sm:$0xf]
  %v26 = vld [vmem:[%s1 + $0x4] sm:$0xf]
  %v27 = vld [vmem:[%s1 + $0x8] sm:$0xf]
  %v28 = vld [vmem:[%s1 + $0xc] sm:$0xf]
  %v29 = vld [vmem:[%s1 + $0x10] sm:$0xf]
  %v30 = vld [vmem:[%s1 + $0x14] sm:$0xf]
  %v31 = vld [vmem:[%s1 + $0x18] sm:$0xf]
  %v32 = vld [vmem:[%s1 + $0x1c] sm:$0xf]
  %v33 = vld [vmem:[%s1 + $0x20] sm:$0xf]
  %v34 = vld [vmem:[%s1 + $0x24] sm:$0xf]
  %v35 = vld [vmem:[%s1 + $0x28] sm:$0xf]
  %v36 = vld [vmem:[%s1 + $0x2c] sm:$0xf]
  %v37 = vld [vmem:[%s1 + $0x30] sm:$0xf]
  %v38 = vld [vmem:[%s1 + $0x34] sm:$0xf]
  %v39 = vld [vmem:[%s1 + $0x38] sm:$0xf]
  %v40 = vld [vmem:[%s1 + $0x3c] sm:$0xf]
  %v41 = vld [vmem:[%s1 + $0x40] sm:$0xf]
  %v42 = vld [vmem:[%s1 + $0x44] sm:$0xf]
  %v43 = vld [vmem:[%s1 + $0x48] sm:$0xf]
  %v44 = vld [vmem:[%s1 + $0x4c] sm:$0xf]
  %v45 = vld [vmem:[%s1 + $0x50] sm:$0xf]
  %v46 = vld [vmem:[%s1 + $0x54] sm:$0xf]
  %v47 = vld [vmem:[%s1 + $0x58] sm:$0xf]
  %v48 = vld [vmem:[%s1 + $0x5c] sm:$0xf]
  %v49 = vld [vmem:[%s1 + $0x60] sm:$0xf]
  %v50 = vld [vmem:[%s1 + $0x64] sm:$0xf]
  %v51 = vld [vmem:[%s1 + $0x68] sm:$0xf]
  %v52 = vld [vmem:[%s1 + $0x6c] sm:$0xf]
  %v53 = vld [vmem:[%s1 + $0x70] sm:$0xf]
  %v54 = vld [vmem:[%s1 + $0x74] sm:$0xf]
  %v55 = vld [vmem:[%s1 + $0x78] sm:$0xf]
  %v56 = vld [vmem:[%s1 + $0x7c] sm:$0xf]
  %v57 = vld [vmem:[%s1 + $0x80] sm:$0xf]
  %v58 = vld [vmem:[%s1 + $0x84] sm:$0xf]
  %v59 = vld [vmem:[%s1 + $0x88] sm:$0xf]
  %v60 = vld [vmem:[%s1 + $0x8c] sm:$0xf]
  %v61 = vld [vmem:[%s1 + $0x90] sm:$0xf]
  %v62 = vld [vmem:[%s1 + $0x94] sm:$0xf]
  %v63 = vld [vmem:[%s1 + $0x98] sm:$0xf]
  %v64 = vld [vmem:[%s1 + $0x9c] sm:$0xf]
  %v65 = vld [vmem:[%s1 + $0xa0] sm:$0xf]
  %v66 = vld [vmem:[%s1 + $0xa4] sm:$0xf]
  %v67 = vld [vmem:[%s1 + $0xa8] sm:$0xf]
  %v68 = vld [vmem:[%s1 + $0xac] sm:$0xf]
  %v69 = vld [vmem:[%s1 + $0xb0] sm:$0xf]
  %v70 = vld [vmem:[%s1 + $0xb4] sm:$0xf]
  %v71 = vld [vmem:[%s1 + $0xb8] sm:$0xf]
  %v72 = vld [vmem:[%s1 + $0xbc] sm:$0xf]
  %v73 = vld [vmem:[%s1 + $0xc0] sm:$0xf]
  %v74 = vld [vmem:[%s1 + $0xc4] sm:$0xf]
  %v75 = vld [vmem:[%s1 + $0xc8] sm:$0xf]
  %v76 = vld [vmem:[%s1 + $0xcc] sm:$0xf]
  %v77 = vld [vmem:[%s1 + $0xd0] sm:$0xf]
  %v78 = vld [vmem:[%s1 + $0xd4] sm:$0xf]
  %v79 = vld [vmem:[%s1 + $0xd8] sm:$0xf]
  %v80 = vld [vmem:[%s1 + $0xdc] sm:$0xf]
  %v81 = vld [vmem:[%s1 + $0xe0] sm:$0xf]
  %v82 = vld [vmem:[%s1 + $0xe4] sm:$0xf]
  %v83 = vld [vmem:[%s1 + $0xe8] sm:$0xf]
  %v84 = vld [vmem:[%s1 + $0xec] sm:$0xf]
  %v85 = vld [vmem:[%s1 + $0xf0] sm:$0xf]
  %v86 = vld [vmem:[%s1 + $0xf4] sm:$0xf]
  %v87 = vld [vmem:[%s1 + $0xf8] sm:$0xf]
  %v88 = vld [vmem:[%s1 + $0xfc] sm:$0xf]
  %v89 = vld [vmem:[%s2] sm:$0x1]
  %v91 = vlaneseq
  %v92 = vshrl.u32 %v91, 7
  %v93 = vsub.s32 0, %v92
  %v94 = vrot.slane %v89, %v93
  %v100 = vunpack.c.l.b16 %v21
  %v101 = vunpack.c.h.b16 %v21
  %v102 = vunpack.c.l.b16 %v22
  %v103 = vunpack.c.h.b16 %v22
  %v104 = vunpack.c.l.b16 %v23
  %v105 = vunpack.c.h.b16 %v23
  %v106 = vunpack.c.l.b16 %v24
  %v107 = vunpack.c.h.b16 %v24
  %v108 = vpack.c.b16 %v104, %v100
  %v109 = vpack.c.b16 %v105, %v101
  %v110 = vpack.c.b16 %v106, %v102
  %v111 = vpack.c.b16 %v107, %v103
  %v180 = vunpack.c.l.b16 %v25
  %v181 = vunpack.c.l.b16 %v26
  %v182 = vunpack.c.l.b16 %v27
  %v183 = vunpack.c.l.b16 %v28
  %v184 = vunpack.c.l.b16 %v29
  %v185 = vunpack.c.l.b16 %v30
  %v186 = vunpack.c.l.b16 %v31
  %v187 = vunpack.c.l.b16 %v32
  %v188 = vunpack.c.l.b16 %v33
  %v189 = vunpack.c.l.b16 %v34
  %v190 = vunpack.c.l.b16 %v35
  %v191 = vunpack.c.l.b16 %v36
  %v192 = vunpack.c.l.b16 %v37
  %v193 = vunpack.c.l.b16 %v38
  %v194 = vunpack.c.l.b16 %v39
  %v195 = vunpack.c.l.b16 %v40
  %v196 = vunpack.c.l.b16 %v41
  %v197 = vunpack.c.l.b16 %v42
  %v198 = vunpack.c.l.b16 %v43
  %v199 = vunpack.c.l.b16 %v44
  %v200 = vunpack.c.l.b16 %v45
  %v201 = vunpack.c.l.b16 %v46
  %v202 = vunpack.c.l.b16 %v47
  %v203 = vunpack.c.l.b16 %v48
  %v204 = vunpack.c.l.b16 %v49
  %v205 = vunpack.c.l.b16 %v50
  %v206 = vunpack.c.l.b16 %v51
  %v207 = vunpack.c.l.b16 %v52
  %v208 = vunpack.c.l.b16 %v53
  %v209 = vunpack.c.l.b16 %v54
  %v210 = vunpack.c.l.b16 %v55
  %v211 = vunpack.c.l.b16 %v56
  %v212 = vunpack.c.l.b16 %v57
  %v213 = vunpack.c.l.b16 %v58
  %v214 = vunpack.c.l.b16 %v59
  %v215 = vunpack.c.l.b16 %v60
  %v216 = vunpack.c.l.b16 %v61
  %v217 = vunpack.c.l.b16 %v62
  %v218 = vunpack.c.l.b16 %v63
  %v219 = vunpack.c.l.b16 %v64
  %v220 = vunpack.c.l.b16 %v65
  %v221 = vunpack.c.l.b16 %v66
  %v222 = vunpack.c.l.b16 %v67
  %v223 = vunpack.c.l.b16 %v68
  %v224 = vunpack.c.l.b16 %v69
  %v225 = vunpack.c.l.b16 %v70
  %v226 = vunpack.c.l.b16 %v71
  %v227 = vunpack.c.l.b16 %v72
  %v228 = vunpack.c.l.b16 %v73
  %v229 = vunpack.c.l.b16 %v74
  %v230 = vunpack.c.l.b16 %v75
  %v231 = vunpack.c.l.b16 %v76
  %v232 = vunpack.c.l.b16 %v77
  %v233 = vunpack.c.l.b16 %v78
  %v234 = vunpack.c.l.b16 %v79
  %v235 = vunpack.c.l.b16 %v80
  %v236 = vunpack.c.l.b16 %v81
  %v237 = vunpack.c.l.b16 %v82
  %v238 = vunpack.c.l.b16 %v83
  %v239 = vunpack.c.l.b16 %v84
  %v240 = vunpack.c.l.b16 %v85
  %v241 = vunpack.c.l.b16 %v86
  %v242 = vunpack.c.l.b16 %v87
  %v243 = vunpack.c.l.b16 %v88
  %v244 = vpack.c.b16 %v181, %v180
  %v245 = vpack.c.b16 %v183, %v182
  %v246 = vpack.c.b16 %v185, %v184
  %v247 = vpack.c.b16 %v187, %v186
  %v248 = vpack.c.b16 %v189, %v188
  %v249 = vpack.c.b16 %v191, %v190
  %v250 = vpack.c.b16 %v193, %v192
  %v251 = vpack.c.b16 %v195, %v194
  %v252 = vpack.c.b16 %v197, %v196
  %v253 = vpack.c.b16 %v199, %v198
  %v254 = vpack.c.b16 %v201, %v200
  %v255 = vpack.c.b16 %v203, %v202
  %v256 = vpack.c.b16 %v205, %v204
  %v257 = vpack.c.b16 %v207, %v206
  %v258 = vpack.c.b16 %v209, %v208
  %v259 = vpack.c.b16 %v211, %v210
  %v260 = vpack.c.b16 %v213, %v212
  %v261 = vpack.c.b16 %v215, %v214
  %v262 = vpack.c.b16 %v217, %v216
  %v263 = vpack.c.b16 %v219, %v218
  %v264 = vpack.c.b16 %v221, %v220
  %v265 = vpack.c.b16 %v223, %v222
  %v266 = vpack.c.b16 %v225, %v224
  %v267 = vpack.c.b16 %v227, %v226
  %v268 = vpack.c.b16 %v229, %v228
  %v269 = vpack.c.b16 %v231, %v230
  %v270 = vpack.c.b16 %v233, %v232
  %v271 = vpack.c.b16 %v235, %v234
  %v272 = vpack.c.b16 %v237, %v236
  %v273 = vpack.c.b16 %v239, %v238
  %v274 = vpack.c.b16 %v241, %v240
  %v275 = vpack.c.b16 %v243, %v242
  %308 = vmatprep.subr.bf16.mxu0 0
  %309 = vmatpush1.bf16.msra.mxu0 %v251
  %310 = vmatprep.subr.bf16.mxu0 0
  %311 = vmatpush1.bf16.msra.mxu0 %v250
  %312 = vmatprep.subr.bf16.mxu0 0
  %313 = vmatpush1.bf16.msra.mxu0 %v249
  %314 = vmatprep.subr.bf16.mxu0 0
  %315 = vmatpush1.bf16.msra.mxu0 %v248
  %316 = vmatprep.subr.bf16.mxu0 0
  %317 = vmatpush1.bf16.msra.mxu0 %v247
  %318 = vmatprep.subr.bf16.mxu0 0
  %319 = vmatpush1.bf16.msra.mxu0 %v246
  %320 = vmatprep.subr.bf16.mxu0 0
  %321 = vmatpush1.bf16.msra.mxu0 %v245
  %322 = vmatprep.subr.bf16.mxu0 0
  %323 = vmatpush1.bf16.msra.mxu0 %v244
  %324 = vmatprep.subr.bf16.mxu0 0
  %325 = vmatpush2.bf16.msra.mxu0 %v259
  %326 = vmatprep.subr.bf16.mxu0 0
  %327 = vmatpush2.bf16.msra.mxu0 %v258
  %328 = vmatprep.subr.bf16.mxu0 0
  %329 = vmatpush2.bf16.msra.mxu0 %v257
  %330 = vmatprep.subr.bf16.mxu0 0
  %331 = vmatpush2.bf16.msra.mxu0 %v256
  %332 = vmatprep.subr.bf16.mxu0 0
  %333 = vmatpush2.bf16.msra.mxu0 %v255
  %334 = vmatprep.subr.bf16.mxu0 0
  %335 = vmatpush2.bf16.msra.mxu0 %v254
  %336 = vmatprep.subr.bf16.mxu0 0
  %337 = vmatpush2.bf16.msra.mxu0 %v253
  %338 = vmatprep.subr.bf16.mxu0 0
  %339 = vmatpush2.bf16.msra.mxu0 %v252
  %340 = vmatprep.mubr.bf16.mxu0 %v109
  %341 = vmatmul.mubr.bf16.gmra.mxu0 %v108
  %v342 = vpop.f32.mrf.mxu0
  %v343 = vadd.f32 %v94, %v342
  %v344 = vpop.f32.mrf.mxu0
  %v345 = vpop.f32.mrf.mxu0
  %v346 = vadd.f32 %v94, %v345
  %v347 = vpop.f32.mrf.mxu0
  %348 = vdwg.mxu0
  %349 = vmatprep.subr.bf16.mxu0 0
  %350 = vmatpush1.bf16.msra.mxu0 %v267
  %351 = vmatprep.subr.bf16.mxu0 0
  %352 = vmatpush1.bf16.msra.mxu0 %v266
  %353 = vmatprep.subr.bf16.mxu0 0
  %354 = vmatpush1.bf16.msra.mxu0 %v265
  %355 = vmatprep.subr.bf16.mxu0 0
  %356 = vmatpush1.bf16.msra.mxu0 %v264
  %357 = vmatprep.subr.bf16.mxu0 0
  %358 = vmatpush1.bf16.msra.mxu0 %v263
  %359 = vmatprep.subr.bf16.mxu0 0
  %360 = vmatpush1.bf16.msra.mxu0 %v262
  %361 = vmatprep.subr.bf16.mxu0 0
  %362 = vmatpush1.bf16.msra.mxu0 %v261
  %363 = vmatprep.subr.bf16.mxu0 0
  %364 = vmatpush1.bf16.msra.mxu0 %v260
  %365 = vmatprep.subr.bf16.mxu0 0
  %366 = vmatpush2.bf16.msra.mxu0 %v275
  %367 = vmatprep.subr.bf16.mxu0 0
  %368 = vmatpush2.bf16.msra.mxu0 %v274
  %369 = vmatprep.subr.bf16.mxu0 0
  %370 = vmatpush2.bf16.msra.mxu0 %v273
  %371 = vmatprep.subr.bf16.mxu0 0
  %372 = vmatpush2.bf16.msra.mxu0 %v272
  %373 = vmatprep.subr.bf16.mxu0 0
  %374 = vmatpush2.bf16.msra.mxu0 %v271
  %375 = vmatprep.subr.bf16.mxu0 0
  %376 = vmatpush2.bf16.msra.mxu0 %v270
  %377 = vmatprep.subr.bf16.mxu0 0
  %378 = vmatpush2.bf16.msra.mxu0 %v269
  %379 = vmatprep.subr.bf16.mxu0 0
  %380 = vmatpush2.bf16.msra.mxu0 %v268
  %381 = vmatprep.mubr.bf16.mxu0 %v111
  %382 = vmatmul.mubr.bf16.gmra.mxu0 %v110
  %v383 = vpop.f32.mrf.mxu0
  %v384 = vadd.f32 %v343, %v383
  %v385 = vpop.f32.mrf.mxu0
  %v386 = vpop.f32.mrf.mxu0
  %v387 = vadd.f32 %v346, %v386
  %v388 = vpop.f32.mrf.mxu0
  %389 = vdwg.mxu0
  %v390 = vmax.f32 %v384, 0.0
  %v391 = vmax.f32 %v387, 0.0
  %v392 = vpack.c.bf16 %v391, %v390
  %v393 = vld [vmem:[%s3] sm:$0xf]
  %v394 = vld [vmem:[%s3 + $0x4] sm:$0xf]
  %v395 = vld [vmem:[%s3 + $0x8] sm:$0xf]
  %v396 = vld [vmem:[%s3 + $0xc] sm:$0xf]
  %v397 = vld [vmem:[%s3 + $0x10] sm:$0xf]
  %v398 = vld [vmem:[%s3 + $0x14] sm:$0xf]
  %v399 = vld [vmem:[%s3 + $0x18] sm:$0xf]
  %v400 = vld [vmem:[%s3 + $0x1c] sm:$0xf]
  %v401 = vld [vmem:[%s3 + $0x20] sm:$0xf]
  %v402 = vld [vmem:[%s3 + $0x24] sm:$0xf]
  %v403 = vld [vmem:[%s3 + $0x28] sm:$0xf]
  %v404 = vld [vmem:[%s3 + $0x2c] sm:$0xf]
  %v405 = vld [vmem:[%s3 + $0x30] sm:$0xf]
  %v406 = vld [vmem:[%s3 + $0x34] sm:$0xf]
  %v407 = vld [vmem:[%s3 + $0x38] sm:$0xf]
  %v408 = vld [vmem:[%s3 + $0x3c] sm:$0xf]
  %v409 = vld [vmem:[%s4] sm:$0x1]
  %v411 = vlaneseq
  %v412 = vshrl.u32 %v411, 7
  %v413 = vsub.s32 0, %v412
  %v414 = vrot.slane %v409, %v413
  %v432 = vunpack.c.l.b16 %v393
  %v433 = vunpack.c.l.b16 %v394
  %v434 = vunpack.c.l.b16 %v395
  %v435 = vunpack.c.l.b16 %v396
  %v436 = vunpack.c.l.b16 %v397
  %v437 = vunpack.c.l.b16 %v398
  %v438 = vunpack.c.l.b16 %v399
  %v439 = vunpack.c.l.b16 %v400
  %v440 = vunpack.c.l.b16 %v401
  %v441 = vunpack.c.l.b16 %v402
  %v442 = vunpack.c.l.b16 %v403
  %v443 = vunpack.c.l.b16 %v404
  %v444 = vunpack.c.l.b16 %v405
  %v445 = vunpack.c.l.b16 %v406
  %v446 = vunpack.c.l.b16 %v407
  %v447 = vunpack.c.l.b16 %v408
  %v448 = vpack.c.b16 %v433, %v432
  %v449 = vpack.c.b16 %v435, %v434
  %v450 = vpack.c.b16 %v437, %v436
  %v451 = vpack.c.b16 %v439, %v438
  %v452 = vpack.c.b16 %v441, %v440
  %v453 = vpack.c.b16 %v443, %v442
  %v454 = vpack.c.b16 %v445, %v444
  %v455 = vpack.c.b16 %v447, %v446
  %464 = vmatprep.subr.bf16.mxu0 0
  %465 = vmatpush1.bf16.msra.mxu0 %v455
  %466 = vmatprep.subr.bf16.mxu0 0
  %467 = vmatpush1.bf16.msra.mxu0 %v454
  %468 = vmatprep.subr.bf16.mxu0 0
  %469 = vmatpush1.bf16.msra.mxu0 %v453
  %470 = vmatprep.subr.bf16.mxu0 0
  %471 = vmatpush1.bf16.msra.mxu0 %v452
  %472 = vmatprep.subr.bf16.mxu0 0
  %473 = vmatpush1.bf16.msra.mxu0 %v451
  %474 = vmatprep.subr.bf16.mxu0 0
  %475 = vmatpush1.bf16.msra.mxu0 %v450
  %476 = vmatprep.subr.bf16.mxu0 0
  %477 = vmatpush1.bf16.msra.mxu0 %v449
  %478 = vmatprep.subr.bf16.mxu0 0
  %479 = vmatpush1.bf16.msra.mxu0 %v448
  %480 = vmatprep.subr.bf16.mxu0 0
  %481 = vmatpush2.bf16.msra.mxu0 0
  %482 = vmatprep.subr.bf16.mxu0 0
  %483 = vmatpush2.bf16.msra.mxu0 0
  %484 = vmatprep.subr.bf16.mxu0 0
  %485 = vmatpush2.bf16.msra.mxu0 0
  %486 = vmatprep.subr.bf16.mxu0 0
  %487 = vmatpush2.bf16.msra.mxu0 0
  %488 = vmatprep.subr.bf16.mxu0 0
  %489 = vmatpush2.bf16.msra.mxu0 0
  %490 = vmatprep.subr.bf16.mxu0 0
  %491 = vmatpush2.bf16.msra.mxu0 0
  %492 = vmatprep.subr.bf16.mxu0 0
  %493 = vmatpush2.bf16.msra.mxu0 0
  %494 = vmatprep.subr.bf16.mxu0 0
  %495 = vmatpush2.bf16.msra.mxu0 0
  %496 = vmatprep.mubr.bf16.mxu0 0
  %497 = vmatmul.mubr.bf16.gmra.mxu0 %v392
  %v498 = vpop.f32.mrf.mxu0
  %v499 = vadd.f32 %v414, %v498
  %v500 = vpop.f32.mrf.mxu0
  %v501 = vpop.f32.mrf.mxu0
  %v502 = vadd.f32 %v414, %v501
  %v503 = vpop.f32.mrf.mxu0
  %504 = vdwg.mxu0
  %505 = vst [vmem:[%s5] sm:$0xff] %v499
  %506 = vst [vmem:[%s5 + $0x8] sm:$0xff] %v502
  // Predicated region
  $region22: #{weightnet_forward.1} parent=0 // pred_check
    _
  $region23: #{weightnet_forward.1} parent=0 // pred_check_branch
    %508 = sbr.rel (0) target = $region25
  $region24: #{weightnet_forward.1} parent=0 // pred_region
    _
  $region25: #{weightnet_forward.1} parent=0 // pred_fallthru
    _
  // Predicated region
  $region26: #{weightnet_forward.1} parent=0 // pred_check
    _
  $region27: #{weightnet_forward.1} parent=0 // pred_check_branch
    %510 = sbr.rel (0) target = $region29
  $region28: #{weightnet_forward.1} parent=0 // pred_region
    _
  $region29: #{weightnet_forward.1} parent=0 // pred_fallthru
    _

</llo_original>
